<compile_context>
chip_gen: v6e
topology: v6e:2x2x1
jax: 0.10.0
libtpu: 0.0.40
codegen_flags: <defaults>
</compile_context>

<pallas_src>
import functools

import jax
import jax.numpy as jnp
from jax import lax
from jax.experimental import pallas as pl
from jax.experimental.pallas import tpu as pltpu


def _round_up(n, m):
    return -(-n // m) * m


def _cdiv(a, b):
    return -(-a // b)


def _dvector_kernel(x_ref, w1_ref, b1_ref, w2_ref, b2_ref,
                    w3_ref, b3_ref, w4_ref, b4_ref, o_ref,
                    *, t_valid, mxu_dtype):
    # x_ref block: (Bb, Tp, F).  Flatten to (Bb*Tp, F); free since Tp % 8 == 0.
    bb, t, f = x_ref.shape
    x = x_ref[...].reshape(bb * t, f)

    # --- per-frame normalization over the feature axis (f32) ---------------
    inv_f = jnp.float32(1.0 / f)
    inv_fm1 = jnp.float32(1.0 / max(f - 1, 1))   # ddof=1 (ref is NaN for f==1)
    mean = jnp.sum(x, axis=-1, keepdims=True) * inv_f
    xc = x - mean                                # centered form (no cancellation)
    var = jnp.sum(xc * xc, axis=-1, keepdims=True) * inv_fm1
    # std clamp (>= 0.01)  <=>  inv_std clamp (<= 100); rsqrt runs on the EUP
    inv_std = jnp.minimum(lax.rsqrt(var), 100.0)
    h = xc * inv_std                             # (Bb*Tp, F), f32

    # --- 4x (Linear + LeakyReLU(0.2)); MXU operands in mxu_dtype ------------
    def layer(h, w_ref, b_ref):
        y = jnp.dot(h.astype(mxu_dtype), w_ref[...],
                    preferred_element_type=jnp.float32)
        y = y + b_ref[...]                       # f32 bias, (1, H) broadcast
        return jnp.maximum(y, 0.2 * y)           # LeakyReLU(0.2), f32

    h = layer(h, w1_ref, b1_ref)
    h = layer(h, w2_ref, b2_ref)
    h = layer(h, w3_ref, b3_ref)
    h = layer(h, w4_ref, b4_ref)                 # (Bb*Tp, 128), f32

    # --- mean pool over the valid frames ------------------------------------
    hr = h.reshape(bb, t, h.shape[-1])           # free: t % 8 == 0
    if t_valid != t:
        # zero-padded frames are NOT zero after the biases -> mask them out.
        fr = lax.broadcasted_iota(jnp.int32, hr.shape, 1)
        hr = jnp.where(fr < t_valid, hr, 0.0)
    o_ref[0] = jnp.sum(hr, axis=1) * jnp.float32(1.0 / t_valid)


def _vmem_capacity_bytes():
    try:
        return int(pltpu.get_tpu_info().vmem_capacity_bytes)
    except Exception:
        return 64 << 20                          # conservative (v7x per-TC)


def dvector_forward(x, params, extract=False, block_batch=None,
                    matmul_dtype=jnp.bfloat16):
    """x: (B, T, indim) float32.  Returns (B, 128) or (B, n_spks) if extract."""
    B, T, F = x.shape
    w1, b1, w2, b2, w3, b3, w4, b4, wc, bc = params
    H1, H2, H3, H4 = w1.shape[1], w2.shape[1], w3.shape[1], w4.shape[1]

    H1p, H2p = _round_up(H1, 128), _round_up(H2, 128)
    H3p, H4p = _round_up(H3, 128), _round_up(H4, 128)   # 128 already
    Tp = _round_up(T, 8)              # keep reshapes on (8,128) tile boundaries

    # --- weights: zero-pad hidden dims to 128 lanes, cast to MXU dtype ------
    def pad2(a, r, c):
        return jnp.pad(a, ((0, r - a.shape[0]), (0, c - a.shape[1])))

    w1p = pad2(w1, F,   H1p).astype(matmul_dtype)       # x stays unpadded: K=F
    w2p = pad2(w2, H1p, H2p).astype(matmul_dtype)
    w3p = pad2(w3, H2p, H3p).astype(matmul_dtype)
    w4p = pad2(w4, H3p, H4p).astype(matmul_dtype)
    b1p, b2p = pad2(b1, 1, H1p), pad2(b2, 1, H2p)       # biases stay f32
    b3p, b4p = pad2(b3, 1, H3p), pad2(b4, 1, H4p)

    # --- generation-aware batch-block selection ------------------------------
    vmem_cap = _vmem_capacity_bytes()
    if vmem_cap >= (100 << 20):       # v5e / v6e: 128 MiB physical VMEM
        vmem_limit, rows_cap = 64 << 20, 8192
    else:                             # v7x: 64 MiB per TensorCore
        vmem_limit, rows_cap = 32 << 20, 4096
    lane = lambda n: _round_up(n, 128)
    # conservative live f32/bf16 temporary bytes per (Bb*Tp) row
    row_bytes = (3 * 4 * lane(F) + 2 * lane(F)
                 + 6 * (lane(H1) + lane(H2) + lane(H3)) + 4 * lane(H4))
    rows_budget = max(256, (vmem_limit // 2) // row_bytes)
    rows_target = min(rows_cap, rows_budget)

    if block_batch is None:
        bb = max(1, min(rows_target // Tp, B))
        nb = _cdiv(B, bb)
        if nb == 1 and B >= 2:
            nb = 2                    # keep both v7x TCs busy on small batches
        bb = _cdiv(B, nb)             # minimal batch padding
    else:
        bb = max(1, min(block_batch, B))
        nb = _cdiv(B, bb)
    Bp = nb * bb

    xp = x
    if Bp != B or Tp != T:
        xp = jnp.pad(x, ((0, Bp - B), (0, Tp - T), (0, 0)))

    full2 = lambda b: (0, 0)
    wb_bytes = sum(int(a.size) * a.dtype.itemsize
                   for a in (w1p, b1p, w2p, b2p, w3p, b3p, w4p, b4p))
    flops = 2 * Bp * Tp * (F * H1p + H1p * H2p + H2p * H3p + H3p * H4p)
    bytes_accessed = 4 * int(xp.size) + wb_bytes + 4 * Bp * H4p

    out = pl.pallas_call(
        functools.partial(_dvector_kernel, t_valid=T, mxu_dtype=matmul_dtype),
        out_shape=jax.ShapeDtypeStruct((nb, bb, H4p), jnp.float32),
        grid=(nb,),
        in_specs=[
            pl.BlockSpec((bb, Tp, F), lambda b: (b, 0, 0)),
            pl.BlockSpec((F, H1p), full2), pl.BlockSpec((1, H1p), full2),
            pl.BlockSpec((H1p, H2p), full2), pl.BlockSpec((1, H2p), full2),
            pl.BlockSpec((H2p, H3p), full2), pl.BlockSpec((1, H3p), full2),
            pl.BlockSpec((H3p, H4p), full2), pl.BlockSpec((1, H4p), full2),
        ],
        out_specs=pl.BlockSpec((1, bb, H4p), lambda b: (b, 0, 0)),
        compiler_params=pltpu.CompilerParams(
            dimension_semantics=("parallel",),
            vmem_limit_bytes=vmem_limit),
        cost_estimate=pl.CostEstimate(
            flops=int(flops), transcendentals=int(Bp * Tp),
            bytes_accessed=int(bytes_accessed)),
    )(xp, w1p, b1p, w2p, b2p, w3p, b3p, w4p, b4p)

    pooled = out.reshape(Bp, H4p)[:B, :H4]               # (B, 128)
    if extract:
        # classifier head: a single tiny (128 x n_spks) matmul, plain-JAX glue
        return pooled @ wc + bc[0]
    return pooled


def _reference(x, params, extract=False):
    """Pure-JAX f32 reference mirroring the PyTorch forward."""
    w1, b1, w2, b2, w3, b3, w4, b4, wc, bc = params
    mean = jnp.mean(x, axis=-1, keepdims=True)
    std = jnp.std(x, axis=-1, keepdims=True, ddof=1)
    std = jnp.maximum(std, 0.01)
    h = (x - mean) / std
    lrelu = lambda y: jnp.where(y >= 0, y, 0.2 * y)
    h = lrelu(h @ w1 + b1[0])
    h = lrelu(h @ w2 + b2[0])
    h = lrelu(h @ w3 + b3[0])
    h = lrelu(h @ w4 + b4[0])
    h = jnp.mean(h, axis=1)
    if extract:
        h = h @ wc + bc[0]
    return h


def make_params(key, indim, outdim, n_spks):
    """Deterministic synthetic parameters (shapes from Dvector.__init__).
    Weights stored as (in, out); PyTorch's (out, in) is transposed at init."""
    ks = jax.random.split(key, 10)

    def lin(kw, kb, fan_in, fan_out):
        s = 1.0 / jnp.sqrt(fan_in)
        w = jax.random.uniform(kw, (fan_in, fan_out), jnp.float32, -s, s)
        b = jax.random.uniform(kb, (1, fan_out), jnp.float32, -s, s)
        return w, b

    w1, b1 = lin(ks[0], ks[1], indim, outdim)
    w2, b2 = lin(ks[2], ks[3], outdim, outdim)
    w3, b3 = lin(ks[4], ks[5], outdim, 128)
    w4, b4 = lin(ks[6], ks[7], 128, 128)
    wc, bc = lin(ks[8], ks[9], 128, n_spks)
    return (w1, b1, w2, b2, w3, b3, w4, b4, wc, bc)


if __name__ == "__main__":
    B, T, INDIM, OUTDIM, N_SPKS = 2, 8, 32, 32, 4

    key = jax.random.PRNGKey(0)
    kx, kp = jax.random.split(key)
    x = jax.random.normal(kx, (B, T, INDIM), jnp.float32)
    params = make_params(kp, INDIM, OUTDIM, N_SPKS)

    ref = _reference(x, params, extract=False)

    # 1) default path (bf16 MXU operands) -- tolerance sized for bf16 rounding
    out = jax.block_until_ready(dvector_forward(x, params, extract=False))
    assert out.shape == (B, 128), out.shape
    assert jnp.allclose(out, ref, atol=5e-2, rtol=5e-2), (
        float(jnp.max(jnp.abs(out - ref))))

    # 2) strict f32 MXU path matches the PyTorch-f32 reference tightly
    out_f32 = jax.block_until_ready(
        dvector_forward(x, params, matmul_dtype=jnp.float32))
    assert jnp.allclose(out_f32, ref, atol=1e-4, rtol=1e-4), (
        float(jnp.max(jnp.abs(out_f32 - ref))))

    # 3) extract=True (classifier head)
    out_clf = jax.block_until_ready(dvector_forward(x, params, extract=True))
    ref_clf = _reference(x, params, extract=True)
    assert out_clf.shape == (B, N_SPKS)
    assert jnp.allclose(out_clf, ref_clf, atol=5e-2, rtol=5e-2)

    # 4) ragged batch (B % bb != 0) + T not a multiple of 8 (frame-mask path)
    B2, T2 = 5, 12
    x2 = jax.random.normal(jax.random.PRNGKey(1), (B2, T2, INDIM), jnp.float32)
    ref2 = _reference(x2, params)
    out2 = jax.block_until_ready(
        dvector_forward(x2, params, block_batch=2, matmul_dtype=jnp.float32))
    assert out2.shape == (B2, 128)
    assert jnp.allclose(out2, ref2, atol=1e-4, rtol=1e-4), (
        float(jnp.max(jnp.abs(out2 - ref2))))
    out2_bf16 = jax.block_until_ready(dvector_forward(x2, params, block_batch=2))
    assert jnp.allclose(out2_bf16, ref2, atol=5e-2, rtol=5e-2)

    print("KERNEL_OK")
</pallas_src>

<mosaic_0001>
module attributes {stable_mosaic.version = 11 : i64} {
  func.func @_dvector_kernel(%arg0: i32, %arg1: memref<1x8x32xf32, #tpu.memory_space<vmem>>, %arg2: memref<32x128xbf16, #tpu.memory_space<vmem>>, %arg3: memref<1x128xf32, #tpu.memory_space<vmem>>, %arg4: memref<128x128xbf16, #tpu.memory_space<vmem>>, %arg5: memref<1x128xf32, #tpu.memory_space<vmem>>, %arg6: memref<128x128xbf16, #tpu.memory_space<vmem>>, %arg7: memref<1x128xf32, #tpu.memory_space<vmem>>, %arg8: memref<128x128xbf16, #tpu.memory_space<vmem>>, %arg9: memref<1x128xf32, #tpu.memory_space<vmem>>, %arg10: memref<1x1x128xf32, #tpu.memory_space<vmem>>) attributes {dimension_semantics = [#tpu.dimension_semantics<parallel>], iteration_bounds = array<i64: 2>, scalar_prefetch = 0 : i64, scratch_operands = 0 : i64, tpu.core_type = #tpu.core_type<tc>, window_params = [{transform_indices = @transform_0, window_bounds = array<i64: 1, 8, 32>}, {pipeline_mode = #tpu.pipeline_mode<synchronous>, transform_indices = @transform_1, window_bounds = array<i64: 32, 128>}, {pipeline_mode = #tpu.pipeline_mode<synchronous>, transform_indices = @transform_2, window_bounds = array<i64: 1, 128>}, {pipeline_mode = #tpu.pipeline_mode<synchronous>, transform_indices = @transform_3, window_bounds = array<i64: 128, 128>}, {pipeline_mode = #tpu.pipeline_mode<synchronous>, transform_indices = @transform_4, window_bounds = array<i64: 1, 128>}, {pipeline_mode = #tpu.pipeline_mode<synchronous>, transform_indices = @transform_5, window_bounds = array<i64: 128, 128>}, {pipeline_mode = #tpu.pipeline_mode<synchronous>, transform_indices = @transform_6, window_bounds = array<i64: 1, 128>}, {pipeline_mode = #tpu.pipeline_mode<synchronous>, transform_indices = @transform_7, window_bounds = array<i64: 128, 128>}, {pipeline_mode = #tpu.pipeline_mode<synchronous>, transform_indices = @transform_8, window_bounds = array<i64: 1, 128>}, {transform_indices = @transform_9, window_bounds = array<i64: 1, 1, 128>}]} {
    %c0 = arith.constant 0 : index
    %c0_0 = arith.constant 0 : index
    %c0_1 = arith.constant 0 : index
    %0 = vector.load %arg1[%c0, %c0_0, %c0_1] : memref<1x8x32xf32, #tpu.memory_space<vmem>>, vector<1x8x32xf32>
    %1 = vector.shape_cast %0 : vector<1x8x32xf32> to vector<8x32xf32>
    %cst = arith.constant dense<0.000000e+00> : vector<8xf32>
    %2 = vector.multi_reduction <add>, %1, %cst [1] : vector<8x32xf32> to vector<8xf32>
    %3 = vector.shape_cast %2 : vector<8xf32> to vector<8x1xf32>
    %cst_2 = arith.constant 3.125000e-02 : f32
    %4 = vector.broadcast %cst_2 : f32 to vector<8x1xf32>
    %5 = arith.mulf %3, %4 : vector<8x1xf32>
    %6 = vector.broadcast %5 : vector<8x1xf32> to vector<8x32xf32>
    %7 = arith.subf %1, %6 : vector<8x32xf32>
    %8 = arith.mulf %7, %7 : vector<8x32xf32>
    %cst_3 = arith.constant dense<0.000000e+00> : vector<8xf32>
    %9 = vector.multi_reduction <add>, %8, %cst_3 [1] : vector<8x32xf32> to vector<8xf32>
    %10 = vector.shape_cast %9 : vector<8xf32> to vector<8x1xf32>
    %cst_4 = arith.constant 0.0322580636 : f32
    %11 = vector.broadcast %cst_4 : f32 to vector<8x1xf32>
    %12 = arith.mulf %10, %11 : vector<8x1xf32>
    %13 = math.rsqrt %12 : vector<8x1xf32>
    %cst_5 = arith.constant 1.000000e+02 : f32
    %14 = vector.broadcast %cst_5 : f32 to vector<8x1xf32>
    %15 = arith.minimumf %13, %14 : vector<8x1xf32>
    %16 = vector.broadcast %15 : vector<8x1xf32> to vector<8x32xf32>
    %17 = arith.mulf %7, %16 : vector<8x32xf32>
    %18 = arith.truncf %17 : vector<8x32xf32> to vector<8x32xbf16>
    %c0_6 = arith.constant 0 : index
    %c0_7 = arith.constant 0 : index
    %19 = vector.load %arg2[%c0_6, %c0_7] : memref<32x128xbf16, #tpu.memory_space<vmem>>, vector<32x128xbf16>
    %cst_8 = arith.constant dense<0.000000e+00> : vector<8x128xf32>
    %20 = tpu.matmul %18, %19, %cst_8 {dimension_numbers = #tpu.dot_dimension_numbers<[1], [0], [0], [1], [0, 0, 1, 1], [], []>} : vector<8x32xbf16>, vector<32x128xbf16>, vector<8x128xf32> -> vector<8x128xf32>
    %c0_9 = arith.constant 0 : index
    %c0_10 = arith.constant 0 : index
    %21 = vector.load %arg3[%c0_9, %c0_10] : memref<1x128xf32, #tpu.memory_space<vmem>>, vector<1x128xf32>
    %22 = vector.broadcast %21 : vector<1x128xf32> to vector<8x128xf32>
    %23 = arith.addf %20, %22 : vector<8x128xf32>
    %cst_11 = arith.constant 2.000000e-01 : f32
    %24 = vector.broadcast %cst_11 : f32 to vector<8x128xf32>
    %25 = arith.mulf %24, %23 : vector<8x128xf32>
    %26 = arith.maximumf %23, %25 : vector<8x128xf32>
    %27 = arith.truncf %26 : vector<8x128xf32> to vector<8x128xbf16>
    %c0_12 = arith.constant 0 : index
    %c0_13 = arith.constant 0 : index
    %28 = vector.load %arg4[%c0_12, %c0_13] : memref<128x128xbf16, #tpu.memory_space<vmem>>, vector<128x128xbf16>
    %cst_14 = arith.constant dense<0.000000e+00> : vector<8x128xf32>
    %29 = tpu.matmul %27, %28, %cst_14 {dimension_numbers = #tpu.dot_dimension_numbers<[1], [0], [0], [1], [0, 0, 1, 1], [], []>} : vector<8x128xbf16>, vector<128x128xbf16>, vector<8x128xf32> -> vector<8x128xf32>
    %c0_15 = arith.constant 0 : index
    %c0_16 = arith.constant 0 : index
    %30 = vector.load %arg5[%c0_15, %c0_16] : memref<1x128xf32, #tpu.memory_space<vmem>>, vector<1x128xf32>
    %31 = vector.broadcast %30 : vector<1x128xf32> to vector<8x128xf32>
    %32 = arith.addf %29, %31 : vector<8x128xf32>
    %cst_17 = arith.constant 2.000000e-01 : f32
    %33 = vector.broadcast %cst_17 : f32 to vector<8x128xf32>
    %34 = arith.mulf %33, %32 : vector<8x128xf32>
    %35 = arith.maximumf %32, %34 : vector<8x128xf32>
    %36 = arith.truncf %35 : vector<8x128xf32> to vector<8x128xbf16>
    %c0_18 = arith.constant 0 : index
    %c0_19 = arith.constant 0 : index
    %37 = vector.load %arg6[%c0_18, %c0_19] : memref<128x128xbf16, #tpu.memory_space<vmem>>, vector<128x128xbf16>
    %cst_20 = arith.constant dense<0.000000e+00> : vector<8x128xf32>
    %38 = tpu.matmul %36, %37, %cst_20 {dimension_numbers = #tpu.dot_dimension_numbers<[1], [0], [0], [1], [0, 0, 1, 1], [], []>} : vector<8x128xbf16>, vector<128x128xbf16>, vector<8x128xf32> -> vector<8x128xf32>
    %c0_21 = arith.constant 0 : index
    %c0_22 = arith.constant 0 : index
    %39 = vector.load %arg7[%c0_21, %c0_22] : memref<1x128xf32, #tpu.memory_space<vmem>>, vector<1x128xf32>
    %40 = vector.broadcast %39 : vector<1x128xf32> to vector<8x128xf32>
    %41 = arith.addf %38, %40 : vector<8x128xf32>
    %cst_23 = arith.constant 2.000000e-01 : f32
    %42 = vector.broadcast %cst_23 : f32 to vector<8x128xf32>
    %43 = arith.mulf %42, %41 : vector<8x128xf32>
    %44 = arith.maximumf %41, %43 : vector<8x128xf32>
    %45 = arith.truncf %44 : vector<8x128xf32> to vector<8x128xbf16>
    %c0_24 = arith.constant 0 : index
    %c0_25 = arith.constant 0 : index
    %46 = vector.load %arg8[%c0_24, %c0_25] : memref<128x128xbf16, #tpu.memory_space<vmem>>, vector<128x128xbf16>
    %cst_26 = arith.constant dense<0.000000e+00> : vector<8x128xf32>
    %47 = tpu.matmul %45, %46, %cst_26 {dimension_numbers = #tpu.dot_dimension_numbers<[1], [0], [0], [1], [0, 0, 1, 1], [], []>} : vector<8x128xbf16>, vector<128x128xbf16>, vector<8x128xf32> -> vector<8x128xf32>
    %c0_27 = arith.constant 0 : index
    %c0_28 = arith.constant 0 : index
    %48 = vector.load %arg9[%c0_27, %c0_28] : memref<1x128xf32, #tpu.memory_space<vmem>>, vector<1x128xf32>
    %49 = vector.broadcast %48 : vector<1x128xf32> to vector<8x128xf32>
    %50 = arith.addf %47, %49 : vector<8x128xf32>
    %cst_29 = arith.constant 2.000000e-01 : f32
    %51 = vector.broadcast %cst_29 : f32 to vector<8x128xf32>
    %52 = arith.mulf %51, %50 : vector<8x128xf32>
    %53 = arith.maximumf %50, %52 : vector<8x128xf32>
    %54 = vector.shape_cast %53 : vector<8x128xf32> to vector<1x8x128xf32>
    %cst_30 = arith.constant dense<0.000000e+00> : vector<1x128xf32>
    %55 = vector.multi_reduction <add>, %54, %cst_30 [1] : vector<1x8x128xf32> to vector<1x128xf32>
    %cst_31 = arith.constant 1.250000e-01 : f32
    %56 = vector.broadcast %cst_31 : f32 to vector<1x128xf32>
    %57 = arith.mulf %55, %56 : vector<1x128xf32>
    %c0_32 = arith.constant 0 : index
    %c0_33 = arith.constant 0 : index
    %c0_34 = arith.constant 0 : index
    %58 = vector.load %arg10[%c0_32, %c0_33, %c0_34] : memref<1x1x128xf32, #tpu.memory_space<vmem>>, vector<1x1x128xf32>
    %59 = vector.shape_cast %58 : vector<1x1x128xf32> to vector<1x128xf32>
    %60 = vector.shape_cast %57 : vector<1x128xf32> to vector<1x1x128xf32>
    tpu.vector_store %arg10[%c0_32, %c0_33, %c0_34], %60 {strides = array<i32>} : memref<1x1x128xf32, #tpu.memory_space<vmem>>, vector<1x1x128xf32>,
    return
  }
  func.func @transform_0(%arg0: i32) -> (i32, i32, i32) {
    %c0_i32 = arith.constant 0 : i32
    %c0_i32_0 = arith.constant 0 : i32
    %c0_i32_1 = arith.constant 0 : i32
    return %arg0, %c0_i32, %c0_i32_0 : i32, i32, i32
  }
  func.func @transform_1(%arg0: i32) -> (i32, i32) {
    %c0_i32 = arith.constant 0 : i32
    %c0_i32_0 = arith.constant 0 : i32
    %c0_i32_1 = arith.constant 0 : i32
    return %c0_i32, %c0_i32_0 : i32, i32
  }
  func.func @transform_2(%arg0: i32) -> (i32, i32) {
    %c0_i32 = arith.constant 0 : i32
    %c0_i32_0 = arith.constant 0 : i32
    %c0_i32_1 = arith.constant 0 : i32
    return %c0_i32, %c0_i32_0 : i32, i32
  }
  func.func @transform_3(%arg0: i32) -> (i32, i32) {
    %c0_i32 = arith.constant 0 : i32
    %c0_i32_0 = arith.constant 0 : i32
    %c0_i32_1 = arith.constant 0 : i32
    return %c0_i32, %c0_i32_0 : i32, i32
  }
  func.func @transform_4(%arg0: i32) -> (i32, i32) {
    %c0_i32 = arith.constant 0 : i32
    %c0_i32_0 = arith.constant 0 : i32
    %c0_i32_1 = arith.constant 0 : i32
    return %c0_i32, %c0_i32_0 : i32, i32
  }
  func.func @transform_5(%arg0: i32) -> (i32, i32) {
    %c0_i32 = arith.constant 0 : i32
    %c0_i32_0 = arith.constant 0 : i32
    %c0_i32_1 = arith.constant 0 : i32
    return %c0_i32, %c0_i32_0 : i32, i32
  }
  func.func @transform_6(%arg0: i32) -> (i32, i32) {
    %c0_i32 = arith.constant 0 : i32
    %c0_i32_0 = arith.constant 0 : i32
    %c0_i32_1 = arith.constant 0 : i32
    return %c0_i32, %c0_i32_0 : i32, i32
  }
  func.func @transform_7(%arg0: i32) -> (i32, i32) {
    %c0_i32 = arith.constant 0 : i32
    %c0_i32_0 = arith.constant 0 : i32
    %c0_i32_1 = arith.constant 0 : i32
    return %c0_i32, %c0_i32_0 : i32, i32
  }
  func.func @transform_8(%arg0: i32) -> (i32, i32) {
    %c0_i32 = arith.constant 0 : i32
    %c0_i32_0 = arith.constant 0 : i32
    %c0_i32_1 = arith.constant 0 : i32
    return %c0_i32, %c0_i32_0 : i32, i32
  }
  func.func @transform_9(%arg0: i32) -> (i32, i32, i32) {
    %c0_i32 = arith.constant 0 : i32
    %c0_i32_0 = arith.constant 0 : i32
    %c0_i32_1 = arith.constant 0 : i32
    return %arg0, %c0_i32, %c0_i32_0 : i32, i32, i32
  }
}

</mosaic_0001>

<llo_original>
// kernel: tpu_custom_call.1
$region0: #{tpu_custom_call.1}
  #allocation0 [shape = 'u32[]', space=smem, size = 0x4, offset = 0x4, fixed_abs, tag = 'smem constant byte address 0x4 - core index']
  #allocation1 [shape = 'u32[144,128]{1,0:T(1,128)}', space=vmem, size = 0x12000, scoped, tag = 'internal scratch']
  %s0 = inlined_call_operand.hbm [shape: f32[2,8,32], index: 0, kind: input, shape index: {}]
  %s1 = inlined_call_operand.hbm [shape: bf16[32,128], index: 1, kind: input, shape index: {}]
  %s2 = inlined_call_operand.vmem [shape: f32[1,128], index: 2, kind: input, shape index: {}]
  %s3 = inlined_call_operand.hbm [shape: bf16[128,128], index: 3, kind: input, shape index: {}]
  %s4 = inlined_call_operand.vmem [shape: f32[1,128], index: 4, kind: input, shape index: {}]
  %s5 = inlined_call_operand.hbm [shape: bf16[128,128], index: 5, kind: input, shape index: {}]
  %s6 = inlined_call_operand.vmem [shape: f32[1,128], index: 6, kind: input, shape index: {}]
  %s7 = inlined_call_operand.hbm [shape: bf16[128,128], index: 7, kind: input, shape index: {}]
  %s8 = inlined_call_operand.vmem [shape: f32[1,128], index: 8, kind: input, shape index: {}]
  %s9 = inlined_call_operand.hbm [shape: f32[2,1,128], index: 9, kind: output, shape index: {}]
  %s10 = sld [smem:[#allocation0]]
  $region89: #{tpu_custom_call.1} parent=0
    _
  %s12 = ssub.s32 1, %s10
  %s13 = scalar_select 0, %s12, %s10
  $region1: #{tpu_custom_call.1} parent=0
    #allocation2 [shape = 'u8[8192]{0}', space=vmem, size = 0x2000, scoped, tag = 'input window, operand 0']
    #allocation3 [shape = 's32[2]{0}', space=sflag, size = 0x8, scoped, tag = 'scoped memory for tpu_custom_call.1']
    #allocation4 [shape = 's32[2]{0}', space=sflag, size = 0x8, scoped, tag = 'scoped memory for tpu_custom_call.1']
    #allocation5 [shape = 'u8[8192]{0}', space=vmem, size = 0x2000, scoped, tag = 'input window, operand 1, single buffered']
    #allocation6 [shape = 's32[1]{0}', space=sflag, size = 0x4, scoped, tag = 'scoped memory for tpu_custom_call.1']
    #allocation7 [shape = 'u8[32768]{0}', space=vmem, size = 0x8000, scoped, tag = 'input window, operand 3, single buffered']
    #allocation8 [shape = 'u8[32768]{0}', space=vmem, size = 0x8000, scoped, tag = 'input window, operand 5, single buffered']
    #allocation9 [shape = 's32[1]{0}', space=sflag, size = 0x4, scoped, tag = 'scoped memory for tpu_custom_call.1']
    #allocation10 [shape = 'u8[32768]{0}', space=vmem, size = 0x8000, scoped, tag = 'input window, operand 7, single buffered']
    #allocation11 [shape = 'u8[1024]{0}', space=vmem, size = 0x400, scoped, tag = 'output window, operand 0']
    %14 = vsyncpa [#allocation3], 0
    %s15 = scalar_lea.sflag [#allocation3], 1
    %16 = vsyncpa %s15, 0
    %17 = vsyncpa [#allocation6], 0
    %18 = vsyncpa [#allocation9], 0
    %19 = vsyncpa [#allocation4], 0
    %s20 = scalar_lea.sflag [#allocation4], 1
    %21 = vsyncpa %s20, 0
    loop: start=0, step=1, limit=4
    $region2: #{tpu_custom_call.1} parent=1 // loop_pre_header
      _
    $region3: #{tpu_custom_call.1} parent=1 // loop_header
      %s23 = sphi 0, %s27
      %p24 = scmp.ge.s32.totalorder %s23, 4
      %s33 = sphi 0, %s35
      %s36 = sphi 0, %s33
      %s37 = sphi 0, %s36
      %s53 = sphi 0, %s37
      %s57 = sphi 0, %s57
      %s59 = sphi 0, %s57
      %s60 = sphi 0, %s59
      %s74 = sphi 0, %s60
      %s78 = sphi 0, %s78
      %s80 = sphi 0, %s78
      %s81 = sphi 0, %s80
      %s95 = sphi 0, %s81
      %s99 = sphi 0, %s99
      %s101 = sphi 0, %s99
      %s102 = sphi 0, %s101
      %s116 = sphi 0, %s102
      %s120 = sphi 0, %s120
      %s122 = sphi 0, %s120
      %s123 = sphi 0, %s122
      %s137 = sphi 0, %s123
      %s141 = sphi 0, %s141
      %s143 = sphi 0, %s141
      %s144 = sphi 0, %s143
      %s158 = sphi 0, %s144
      %s162 = sphi 0, %s162
      %s164 = sphi 0, %s162
      %s165 = sphi 0, %s164
      %s179 = sphi 0, %s165
      %s183 = sphi 0, %s183
      %s185 = sphi 0, %s183
      %s186 = sphi 0, %s185
      %s200 = sphi 0, %s186
      %s204 = sphi 0, %s204
      %s206 = sphi 0, %s204
      %s207 = sphi 0, %s206
      %s221 = sphi 0, %s207
      %s227 = sphi 0, %s229
      %s230 = sphi 0, %s227
      %s231 = sphi 0, %s230
      %s247 = sphi 0, %s231
    $region4: #{tpu_custom_call.1} parent=1 // loop_header_branch
      %26 = sbr.rel (%p24) target = $region8
    $region5: #{tpu_custom_call.1} parent=1 // loop_body
      %s28 = ssub.s32 %s23, 1
      %s29 = ssub.s32 %s23, 2
      %s30 = sadd.s32 %s23, 1
      %s31 = ssub.s32 %s23, %s30
      %p32 = scmp.eq.s32.totalorder %s31, 0
      %s34 = sadd.s32 %s33, 1
      %s35 = scalar_select %p32, %s33, %s34
      %p38 = pneg %p32
      %p39 = scmp.eq.s32.totalorder %s23, 1
      %p40 = por %p38, %p39
      %p41 = scmp.ne.s32.totalorder %s33, %s36
      %p42 = scmp.eq.s32.totalorder %s23, 0
      %p43 = por %p41, %p42
      %p44 = scmp.ne.s32.totalorder %s33, %s36
      %p45 = scmp.eq.s32.totalorder %s28, 1
      %p46 = por %p44, %p45
      %p47 = scmp.ne.s32.totalorder %s36, %s37
      %p48 = scmp.eq.s32.totalorder %s28, 0
      %p49 = por %p47, %p48
      %p50 = scmp.ne.s32.totalorder %s36, %s37
      %p51 = scmp.eq.s32.totalorder %s29, 1
      %p52 = por %p50, %p51
      %p54 = scmp.ne.s32.totalorder %s37, %s53
      %p55 = scmp.eq.s32.totalorder %s29, 0
      %p56 = por %p54, %p55
      %s58 = sadd.s32 %s57, 1
      %p61 = scmp.eq.s32.totalorder %s23, 1
      %p62 = scmp.ne.s32.totalorder %s57, %s59
      %p63 = scmp.eq.s32.totalorder %s23, 0
      %p64 = por %p62, %p63
      %p65 = scmp.ne.s32.totalorder %s57, %s59
      %p66 = scmp.eq.s32.totalorder %s28, 1
      %p67 = por %p65, %p66
      %p68 = scmp.ne.s32.totalorder %s59, %s60
      %p69 = scmp.eq.s32.totalorder %s28, 0
      %p70 = por %p68, %p69
      %p71 = scmp.ne.s32.totalorder %s59, %s60
      %p72 = scmp.eq.s32.totalorder %s29, 1
      %p73 = por %p71, %p72
      %p75 = scmp.ne.s32.totalorder %s60, %s74
      %p76 = scmp.eq.s32.totalorder %s29, 0
      %p77 = por %p75, %p76
      %s79 = sadd.s32 %s78, 1
      %p82 = scmp.eq.s32.totalorder %s23, 1
      %p83 = scmp.ne.s32.totalorder %s78, %s80
      %p84 = scmp.eq.s32.totalorder %s23, 0
      %p85 = por %p83, %p84
      %p86 = scmp.ne.s32.totalorder %s78, %s80
      %p87 = scmp.eq.s32.totalorder %s28, 1
      %p88 = por %p86, %p87
      %p89 = scmp.ne.s32.totalorder %s80, %s81
      %p90 = scmp.eq.s32.totalorder %s28, 0
      %p91 = por %p89, %p90
      %p92 = scmp.ne.s32.totalorder %s80, %s81
      %p93 = scmp.eq.s32.totalorder %s29, 1
      %p94 = por %p92, %p93
      %p96 = scmp.ne.s32.totalorder %s81, %s95
      %p97 = scmp.eq.s32.totalorder %s29, 0
      %p98 = por %p96, %p97
      %s100 = sadd.s32 %s99, 1
      %p103 = scmp.eq.s32.totalorder %s23, 1
      %p104 = scmp.ne.s32.totalorder %s99, %s101
      %p105 = scmp.eq.s32.totalorder %s23, 0
      %p106 = por %p104, %p105
      %p107 = scmp.ne.s32.totalorder %s99, %s101
      %p108 = scmp.eq.s32.totalorder %s28, 1
      %p109 = por %p107, %p108
      %p110 = scmp.ne.s32.totalorder %s101, %s102
      %p111 = scmp.eq.s32.totalorder %s28, 0
      %p112 = por %p110, %p111
      %p113 = scmp.ne.s32.totalorder %s101, %s102
      %p114 = scmp.eq.s32.totalorder %s29, 1
      %p115 = por %p113, %p114
      %p117 = scmp.ne.s32.totalorder %s102, %s116
      %p118 = scmp.eq.s32.totalorder %s29, 0
      %p119 = por %p117, %p118
      %s121 = sadd.s32 %s120, 1
      %p124 = scmp.eq.s32.totalorder %s23, 1
      %p125 = scmp.ne.s32.totalorder %s120, %s122
      %p126 = scmp.eq.s32.totalorder %s23, 0
      %p127 = por %p125, %p126
      %p128 = scmp.ne.s32.totalorder %s120, %s122
      %p129 = scmp.eq.s32.totalorder %s28, 1
      %p130 = por %p128, %p129
      %p131 = scmp.ne.s32.totalorder %s122, %s123
      %p132 = scmp.eq.s32.totalorder %s28, 0
      %p133 = por %p131, %p132
      %p134 = scmp.ne.s32.totalorder %s122, %s123
      %p135 = scmp.eq.s32.totalorder %s29, 1
      %p136 = por %p134, %p135
      %p138 = scmp.ne.s32.totalorder %s123, %s137
      %p139 = scmp.eq.s32.totalorder %s29, 0
      %p140 = por %p138, %p139
      %s142 = sadd.s32 %s141, 1
      %p145 = scmp.eq.s32.totalorder %s23, 1
      %p146 = scmp.ne.s32.totalorder %s141, %s143
      %p147 = scmp.eq.s32.totalorder %s23, 0
      %p148 = por %p146, %p147
      %p149 = scmp.ne.s32.totalorder %s141, %s143
      %p150 = scmp.eq.s32.totalorder %s28, 1
      %p151 = por %p149, %p150
      %p152 = scmp.ne.s32.totalorder %s143, %s144
      %p153 = scmp.eq.s32.totalorder %s28, 0
      %p154 = por %p152, %p153
      %p155 = scmp.ne.s32.totalorder %s143, %s144
      %p156 = scmp.eq.s32.totalorder %s29, 1
      %p157 = por %p155, %p156
      %p159 = scmp.ne.s32.totalorder %s144, %s158
      %p160 = scmp.eq.s32.totalorder %s29, 0
      %p161 = por %p159, %p160
      %s163 = sadd.s32 %s162, 1
      %p166 = scmp.eq.s32.totalorder %s23, 1
      %p167 = scmp.ne.s32.totalorder %s162, %s164
      %p168 = scmp.eq.s32.totalorder %s23, 0
      %p169 = por %p167, %p168
      %p170 = scmp.ne.s32.totalorder %s162, %s164
      %p171 = scmp.eq.s32.totalorder %s28, 1
      %p172 = por %p170, %p171
      %p173 = scmp.ne.s32.totalorder %s164, %s165
      %p174 = scmp.eq.s32.totalorder %s28, 0
      %p175 = por %p173, %p174
      %p176 = scmp.ne.s32.totalorder %s164, %s165
      %p177 = scmp.eq.s32.totalorder %s29, 1
      %p178 = por %p176, %p177
      %p180 = scmp.ne.s32.totalorder %s165, %s179
      %p181 = scmp.eq.s32.totalorder %s29, 0
      %p182 = por %p180, %p181
      %s184 = sadd.s32 %s183, 1
      %p187 = scmp.eq.s32.totalorder %s23, 1
      %p188 = scmp.ne.s32.totalorder %s183, %s185
      %p189 = scmp.eq.s32.totalorder %s23, 0
      %p190 = por %p188, %p189
      %p191 = scmp.ne.s32.totalorder %s183, %s185
      %p192 = scmp.eq.s32.totalorder %s28, 1
      %p193 = por %p191, %p192
      %p194 = scmp.ne.s32.totalorder %s185, %s186
      %p195 = scmp.eq.s32.totalorder %s28, 0
      %p196 = por %p194, %p195
      %p197 = scmp.ne.s32.totalorder %s185, %s186
      %p198 = scmp.eq.s32.totalorder %s29, 1
      %p199 = por %p197, %p198
      %p201 = scmp.ne.s32.totalorder %s186, %s200
      %p202 = scmp.eq.s32.totalorder %s29, 0
      %p203 = por %p201, %p202
      %s205 = sadd.s32 %s204, 1
      %p208 = scmp.eq.s32.totalorder %s23, 1
      %p209 = scmp.ne.s32.totalorder %s204, %s206
      %p210 = scmp.eq.s32.totalorder %s23, 0
      %p211 = por %p209, %p210
      %p212 = scmp.ne.s32.totalorder %s204, %s206
      %p213 = scmp.eq.s32.totalorder %s28, 1
      %p214 = por %p212, %p213
      %p215 = scmp.ne.s32.totalorder %s206, %s207
      %p216 = scmp.eq.s32.totalorder %s28, 0
      %p217 = por %p215, %p216
      %p218 = scmp.ne.s32.totalorder %s206, %s207
      %p219 = scmp.eq.s32.totalorder %s29, 1
      %p220 = por %p218, %p219
      %p222 = scmp.ne.s32.totalorder %s207, %s221
      %p223 = scmp.eq.s32.totalorder %s29, 0
      %p224 = por %p222, %p223
      %s225 = ssub.s32 %s23, %s30
      %p226 = scmp.eq.s32.totalorder %s225, 0
      %s228 = sadd.s32 %s227, 1
      %s229 = scalar_select %p226, %s227, %s228
      %p232 = pneg %p226
      %p233 = scmp.eq.s32.totalorder %s23, 1
      %p234 = por %p232, %p233
      %p235 = scmp.ne.s32.totalorder %s227, %s230
      %p236 = scmp.eq.s32.totalorder %s23, 0
      %p237 = por %p235, %p236
      %p238 = scmp.ne.s32.totalorder %s227, %s230
      %p239 = scmp.eq.s32.totalorder %s28, 1
      %p240 = por %p238, %p239
      %p241 = scmp.ne.s32.totalorder %s230, %s231
      %p242 = scmp.eq.s32.totalorder %s28, 0
      %p243 = por %p241, %p242
      %p244 = scmp.ne.s32.totalorder %s230, %s231
      %p245 = scmp.eq.s32.totalorder %s29, 1
      %p246 = por %p244, %p245
      %p248 = scmp.ne.s32.totalorder %s231, %s247
      %p249 = scmp.eq.s32.totalorder %s29, 0
      %p250 = por %p248, %p249
      %p251 = scmp.le.s32.totalorder 1, %s23
      %p252 = scmp.lt.s32.totalorder %s23, 3
      %p253 = pnand %p251, %p252
      %p254 = pneg %p253
      // Predicated region
      $region9: #{tpu_custom_call.1} parent=5 // pred_check
        _
      $region10: #{tpu_custom_call.1} parent=5 // pred_check_branch
        %256 = sbr.rel (%p253) target = $region12
      $region11: #{tpu_custom_call.1} parent=5 // pred_region
        %s257 = ssub.s32 %s23, 1
        // Predicated region
        $region13: #{tpu_custom_call.1} parent=11 // pred_check
          %p258 = pneg %p70
        $region14: #{tpu_custom_call.1} parent=11 // pred_check_branch
          %260 = sbr.rel (%p258) target = $region16
        $region15: #{tpu_custom_call.1} parent=11 // pred_region
          %s262 = ssub.s32 256, 256
          %263 = vsyncadd [#allocation6], %s262
          %s264 = sshll.u32 [#allocation5], 4
          %s265 = int_to_ptr.vmem [resolvable:$true] %s264
          %270 = dma.hbm_to_vmem [thread:$0]  %s1, 256, %s265, [#allocation6], 64, 64, 4
        $region16: #{tpu_custom_call.1} parent=11 // pred_fallthru
          _
        // Predicated region
        $region17: #{tpu_custom_call.1} parent=11 // pred_check
          %p271 = pneg %p91
        $region18: #{tpu_custom_call.1} parent=11 // pred_check_branch
          %273 = sbr.rel (%p271) target = $region20
        $region19: #{tpu_custom_call.1} parent=11 // pred_region
          _
        $region20: #{tpu_custom_call.1} parent=11 // pred_fallthru
          _
        // Predicated region
        $region21: #{tpu_custom_call.1} parent=11 // pred_check
          %p274 = pneg %p112
        $region22: #{tpu_custom_call.1} parent=11 // pred_check_branch
          %276 = sbr.rel (%p274) target = $region24
        $region23: #{tpu_custom_call.1} parent=11 // pred_region
          %s278 = ssub.s32 1024, 1024
          %279 = vsyncadd [#allocation6], %s278
          %s280 = sshll.u32 [#allocation7], 4
          %s281 = int_to_ptr.vmem [resolvable:$true] %s280
          %286 = dma.hbm_to_vmem [thread:$0]  %s3, 1024, %s281, [#allocation6], 64, 64, 4
        $region24: #{tpu_custom_call.1} parent=11 // pred_fallthru
          _
        // Predicated region
        $region25: #{tpu_custom_call.1} parent=11 // pred_check
          %p287 = pneg %p133
        $region26: #{tpu_custom_call.1} parent=11 // pred_check_branch
          %289 = sbr.rel (%p287) target = $region28
        $region27: #{tpu_custom_call.1} parent=11 // pred_region
          _
        $region28: #{tpu_custom_call.1} parent=11 // pred_fallthru
          _
        // Predicated region
        $region29: #{tpu_custom_call.1} parent=11 // pred_check
          %p290 = pneg %p154
        $region30: #{tpu_custom_call.1} parent=11 // pred_check_branch
          %292 = sbr.rel (%p290) target = $region32
        $region31: #{tpu_custom_call.1} parent=11 // pred_region
          %s294 = ssub.s32 1024, 1024
          %295 = vsyncadd [#allocation9], %s294
          %s296 = sshll.u32 [#allocation8], 4
          %s297 = int_to_ptr.vmem [resolvable:$true] %s296
          %302 = dma.hbm_to_vmem [thread:$0]  %s5, 1024, %s297, [#allocation9], 64, 64, 4
        $region32: #{tpu_custom_call.1} parent=11 // pred_fallthru
          _
        // Predicated region
        $region33: #{tpu_custom_call.1} parent=11 // pred_check
          %p303 = pneg %p175
        $region34: #{tpu_custom_call.1} parent=11 // pred_check_branch
          %305 = sbr.rel (%p303) target = $region36
        $region35: #{tpu_custom_call.1} parent=11 // pred_region
          _
        $region36: #{tpu_custom_call.1} parent=11 // pred_fallthru
          _
        // Predicated region
        $region37: #{tpu_custom_call.1} parent=11 // pred_check
          %p306 = pneg %p196
        $region38: #{tpu_custom_call.1} parent=11 // pred_check_branch
          %308 = sbr.rel (%p306) target = $region40
        $region39: #{tpu_custom_call.1} parent=11 // pred_region
          %s310 = ssub.s32 1024, 1024
          %311 = vsyncadd [#allocation9], %s310
          %s312 = sshll.u32 [#allocation10], 4
          %s313 = int_to_ptr.vmem [resolvable:$true] %s312
          %318 = dma.hbm_to_vmem [thread:$0]  %s7, 1024, %s313, [#allocation9], 64, 64, 4
        $region40: #{tpu_custom_call.1} parent=11 // pred_fallthru
          _
        // Predicated region
        $region41: #{tpu_custom_call.1} parent=11 // pred_check
          %p319 = pneg %p217
        $region42: #{tpu_custom_call.1} parent=11 // pred_check_branch
          %321 = sbr.rel (%p319) target = $region44
        $region43: #{tpu_custom_call.1} parent=11 // pred_region
          _
        $region44: #{tpu_custom_call.1} parent=11 // pred_fallthru
          _
      $region12: #{tpu_custom_call.1} parent=5 // pred_fallthru
        _
      %p322 = scmp.lt.s32.totalorder %s23, 2
      // Predicated region
      $region45: #{tpu_custom_call.1} parent=5 // pred_check
        %p323 = pneg %p322
      $region46: #{tpu_custom_call.1} parent=5 // pred_check_branch
        %325 = sbr.rel (%p323) target = $region48
      $region47: #{tpu_custom_call.1} parent=5 // pred_region
        // Predicated region
        $region49: #{tpu_custom_call.1} parent=47 // pred_check
          %p326 = pneg %p43
        $region50: #{tpu_custom_call.1} parent=47 // pred_check_branch
          %328 = sbr.rel (%p326) target = $region52
        $region51: #{tpu_custom_call.1} parent=47 // pred_region
          %s329 = sand.u32 %s33, 1
          %s330 = scalar_lea.sflag [#allocation3], %s329
          %s331 = sand.u32 %s33, 1
          %s332 = smul.addr %s331, 8
          %s333 = scalar_lea.vmem [#allocation2], %s332
          %s335 = ssub.s32 128, 128
          %336 = vsyncadd %s330, %s335
          %s337 = smul.addr %s23, 128
          %s338 = scalar_lea.hbm %s0, %s337
          %s340 = sshll.u32 %s333, 4
          %s341 = int_to_ptr.vmem [resolvable:$true] %s340
          %343 = dma.hbm_to_vmem [thread:$0]  %s338, 128, %s341, %s330
        $region52: #{tpu_custom_call.1} parent=47 // pred_fallthru
          _
      $region48: #{tpu_custom_call.1} parent=5 // pred_fallthru
        _
      %p344 = scmp.le.s32.totalorder 1, %s23
      %p345 = scmp.lt.s32.totalorder %s23, 3
      %p346 = pnand %p344, %p345
      %p347 = pneg %p346
      // Predicated region
      $region53: #{tpu_custom_call.1} parent=5 // pred_check
        _
      $region54: #{tpu_custom_call.1} parent=5 // pred_check_branch
        %349 = sbr.rel (%p346) target = $region56
      $region55: #{tpu_custom_call.1} parent=5 // pred_region
        %s350 = ssub.s32 %s23, 1
        %s351 = sand.u32 %s36, 1
        %s352 = scalar_lea.sflag [#allocation3], %s351
        %s353 = sand.u32 %s36, 1
        %s354 = smul.addr %s353, 8
        %s355 = scalar_lea.vmem [#allocation2], %s354
        // Predicated region
        $region57: #{tpu_custom_call.1} parent=55 // pred_check
          %p356 = pneg %p49
        $region58: #{tpu_custom_call.1} parent=55 // pred_check_branch
          %358 = sbr.rel (%p356) target = $region60
        $region59: #{tpu_custom_call.1} parent=55 // pred_region
          %359 = dma.done %s352, 128
        $region60: #{tpu_custom_call.1} parent=55 // pred_fallthru
          _
        // Predicated region
        $region61: #{tpu_custom_call.1} parent=55 // pred_check
          %p360 = pneg %p70
        $region62: #{tpu_custom_call.1} parent=55 // pred_check_branch
          %362 = sbr.rel (%p360) target = $region64
        $region63: #{tpu_custom_call.1} parent=55 // pred_region
          %363 = dma.done [#allocation6], 256
        $region64: #{tpu_custom_call.1} parent=55 // pred_fallthru
          _
        // Predicated region
        $region65: #{tpu_custom_call.1} parent=55 // pred_check
          %p364 = pneg %p112
        $region66: #{tpu_custom_call.1} parent=55 // pred_check_branch
          %366 = sbr.rel (%p364) target = $region68
        $region67: #{tpu_custom_call.1} parent=55 // pred_region
          %367 = dma.done [#allocation6], 1024
        $region68: #{tpu_custom_call.1} parent=55 // pred_fallthru
          _
        // Predicated region
        $region69: #{tpu_custom_call.1} parent=55 // pred_check
          %p368 = pneg %p154
        $region70: #{tpu_custom_call.1} parent=55 // pred_check_branch
          %370 = sbr.rel (%p368) target = $region72
        $region71: #{tpu_custom_call.1} parent=55 // pred_region
          %371 = dma.done [#allocation9], 1024
        $region72: #{tpu_custom_call.1} parent=55 // pred_fallthru
          _
        // Predicated region
        $region73: #{tpu_custom_call.1} parent=55 // pred_check
          %p372 = pneg %p196
        $region74: #{tpu_custom_call.1} parent=55 // pred_check_branch
          %374 = sbr.rel (%p372) target = $region76
        $region75: #{tpu_custom_call.1} parent=55 // pred_region
          %375 = dma.done [#allocation9], 1024
        $region76: #{tpu_custom_call.1} parent=55 // pred_fallthru
          _
        %s376 = sand.u32 %s36, 1
        %s377 = scalar_lea.sflag [#allocation3], %s376
        %s378 = sand.u32 %s36, 1
        %s379 = smul.addr %s378, 8
        %s380 = scalar_lea.vmem [#allocation2], %s379
        %p381 = pneg %p49
        %p382 = pneg %p46
        %p383 = pneg %p70
        %p384 = pneg %p67
        %p385 = pneg %p91
        %p386 = pneg %p88
        %p387 = pneg %p112
        %p388 = pneg %p109
        %p389 = pneg %p133
        %p390 = pneg %p130
        %p391 = pneg %p154
        %p392 = pneg %p151
        %p393 = pneg %p175
        %p394 = pneg %p172
        %p395 = pneg %p196
        %p396 = pneg %p193
        %p397 = pneg %p217
        %p398 = pneg %p214
        %p399 = pneg %p243
        %p400 = pneg %p240
        %s401 = sand.u32 %s230, 1
        %s402 = scalar_lea.sflag [#allocation4], %s401
        %s403 = sand.u32 %s230, 1
        %s404 = scalar_lea.vmem [#allocation11], %s403
        %v406 = vld [vmem:[%s355] sm:$0xff]
        %vm407 = vcmask 261120
        %v408 = vsel %vm407, %v406, 0.0
        %409 = vadd.xlane.f32.xlu0 %v408
        %v410 = vpop.xlane.xlu0 %409
        %v411 = vmul.f32 %v410, 0.03125
        %v412 = vsub.f32 %v406, %v411
        %v413 = vmul.f32 %v412, %v412
        %v414 = vsel %vm407, %v413, 0.0
        %415 = vadd.xlane.f32.xlu0 %v414
        %v416 = vpop.xlane.xlu0 %415
        %v417 = vmul.f32 %v416, 0.032258064
        %v418 = vrsqrt.pop %v417
        %v419 = vmin.f32 %v418, 100.0
        %v420 = vmul.f32 %v412, %v419
        %v421 = vpack.c.bf16 %v420, %v420
        %v422 = vld [vmem:[#allocation5] sm:$0xf]
        %v423 = vld [vmem:[#allocation5 + $0x4] sm:$0xf]
        %v424 = vld [vmem:[#allocation5 + $0x8] sm:$0xf]
        %v425 = vld [vmem:[#allocation5 + $0xc] sm:$0xf]
        %v426 = vld [vmem:[%s2] sm:$0x1]
        %v428 = vlaneseq
        %v429 = vshrl.u32 %v428, 7
        %v430 = vsub.s32 0, %v429
        %v431 = vrot.slane %v426, %v430
        %v437 = vunpack.c.l.b16 %v422
        %v438 = vunpack.c.l.b16 %v423
        %v439 = vunpack.c.l.b16 %v424
        %v440 = vunpack.c.l.b16 %v425
        %v441 = vpack.c.b16 %v438, %v437
        %v442 = vpack.c.b16 %v440, %v439
        %v446 = vsel %vm407, %v421, 0
        %448 = vmatprep.subr.bf16.mxu0 0
        %449 = vmatpush1.bf16.msra.mxu0 0
        %450 = vmatprep.subr.bf16.mxu0 0
        %451 = vmatpush1.bf16.msra.mxu0 0
        %452 = vmatprep.subr.bf16.mxu0 0
        %453 = vmatpush1.bf16.msra.mxu0 0
        %454 = vmatprep.subr.bf16.mxu0 0
        %455 = vmatpush1.bf16.msra.mxu0 0
        %456 = vmatprep.subr.bf16.mxu0 0
        %457 = vmatpush1.bf16.msra.mxu0 0
        %458 = vmatprep.subr.bf16.mxu0 0
        %459 = vmatpush1.bf16.msra.mxu0 0
        %460 = vmatprep.subr.bf16.mxu0 0
        %461 = vmatpush1.bf16.msra.mxu0 %v442
        %462 = vmatprep.subr.bf16.mxu0 0
        %463 = vmatpush1.bf16.msra.mxu0 %v441
        %464 = vmatprep.subr.bf16.mxu0 0
        %465 = vmatpush2.bf16.msra.mxu0 0
        %466 = vmatprep.subr.bf16.mxu0 0
        %467 = vmatpush2.bf16.msra.mxu0 0
        %468 = vmatprep.subr.bf16.mxu0 0
        %469 = vmatpush2.bf16.msra.mxu0 0
        %470 = vmatprep.subr.bf16.mxu0 0
        %471 = vmatpush2.bf16.msra.mxu0 0
        %472 = vmatprep.subr.bf16.mxu0 0
        %473 = vmatpush2.bf16.msra.mxu0 0
        %474 = vmatprep.subr.bf16.mxu0 0
        %475 = vmatpush2.bf16.msra.mxu0 0
        %476 = vmatprep.subr.bf16.mxu0 0
        %477 = vmatpush2.bf16.msra.mxu0 0
        %478 = vmatprep.subr.bf16.mxu0 0
        %479 = vmatpush2.bf16.msra.mxu0 0
        %480 = vmatprep.mubr.bf16.mxu0 0
        %481 = vmatmul.mubr.bf16.gmra.mxu0 %v446
        %v482 = vpop.f32.mrf.mxu0
        %v483 = vadd.f32 %v431, %v482
        %v484 = vpop.f32.mrf.mxu0
        %v485 = vpop.f32.mrf.mxu0
        %v486 = vpop.f32.mrf.mxu0
        %487 = vdwg.mxu0
        %v488 = vmul.f32 %v483, 0.2
        %v489 = vmax.f32 %v483, %v488
        %v490 = vpack.c.bf16 %v489, %v489
        %v491 = vld [vmem:[#allocation7] sm:$0xf]
        %v492 = vld [vmem:[#allocation7 + $0x4] sm:$0xf]
        %v493 = vld [vmem:[#allocation7 + $0x8] sm:$0xf]
        %v494 = vld [vmem:[#allocation7 + $0xc] sm:$0xf]
        %v495 = vld [vmem:[#allocation7 + $0x10] sm:$0xf]
        %v496 = vld [vmem:[#allocation7 + $0x14] sm:$0xf]
        %v497 = vld [vmem:[#allocation7 + $0x18] sm:$0xf]
        %v498 = vld [vmem:[#allocation7 + $0x1c] sm:$0xf]
        %v499 = vld [vmem:[#allocation7 + $0x20] sm:$0xf]
        %v500 = vld [vmem:[#allocation7 + $0x24] sm:$0xf]
        %v501 = vld [vmem:[#allocation7 + $0x28] sm:$0xf]
        %v502 = vld [vmem:[#allocation7 + $0x2c] sm:$0xf]
        %v503 = vld [vmem:[#allocation7 + $0x30] sm:$0xf]
        %v504 = vld [vmem:[#allocation7 + $0x34] sm:$0xf]
        %v505 = vld [vmem:[#allocation7 + $0x38] sm:$0xf]
        %v506 = vld [vmem:[#allocation7 + $0x3c] sm:$0xf]
        %v507 = vld [vmem:[%s4] sm:$0x1]
        %v509 = vlaneseq
        %v510 = vshrl.u32 %v509, 7
        %v511 = vsub.s32 0, %v510
        %v512 = vrot.slane %v507, %v511
        %v530 = vunpack.c.l.b16 %v491
        %v531 = vunpack.c.l.b16 %v492
        %v532 = vunpack.c.l.b16 %v493
        %v533 = vunpack.c.l.b16 %v494
        %v534 = vunpack.c.l.b16 %v495
        %v535 = vunpack.c.l.b16 %v496
        %v536 = vunpack.c.l.b16 %v497
        %v537 = vunpack.c.l.b16 %v498
        %v538 = vunpack.c.l.b16 %v499
        %v539 = vunpack.c.l.b16 %v500
        %v540 = vunpack.c.l.b16 %v501
        %v541 = vunpack.c.l.b16 %v502
        %v542 = vunpack.c.l.b16 %v503
        %v543 = vunpack.c.l.b16 %v504
        %v544 = vunpack.c.l.b16 %v505
        %v545 = vunpack.c.l.b16 %v506
        %v546 = vpack.c.b16 %v531, %v530
        %v547 = vpack.c.b16 %v533, %v532
        %v548 = vpack.c.b16 %v535, %v534
        %v549 = vpack.c.b16 %v537, %v536
        %v550 = vpack.c.b16 %v539, %v538
        %v551 = vpack.c.b16 %v541, %v540
        %v552 = vpack.c.b16 %v543, %v542
        %v553 = vpack.c.b16 %v545, %v544
        %562 = vmatprep.subr.bf16.mxu0 0
        %563 = vmatpush1.bf16.msra.mxu0 %v553
        %564 = vmatprep.subr.bf16.mxu0 0
        %565 = vmatpush1.bf16.msra.mxu0 %v552
        %566 = vmatprep.subr.bf16.mxu0 0
        %567 = vmatpush1.bf16.msra.mxu0 %v551
        %568 = vmatprep.subr.bf16.mxu0 0
        %569 = vmatpush1.bf16.msra.mxu0 %v550
        %570 = vmatprep.subr.bf16.mxu0 0
        %571 = vmatpush1.bf16.msra.mxu0 %v549
        %572 = vmatprep.subr.bf16.mxu0 0
        %573 = vmatpush1.bf16.msra.mxu0 %v548
        %574 = vmatprep.subr.bf16.mxu0 0
        %575 = vmatpush1.bf16.msra.mxu0 %v547
        %576 = vmatprep.subr.bf16.mxu0 0
        %577 = vmatpush1.bf16.msra.mxu0 %v546
        %578 = vmatprep.subr.bf16.mxu0 0
        %579 = vmatpush2.bf16.msra.mxu0 0
        %580 = vmatprep.subr.bf16.mxu0 0
        %581 = vmatpush2.bf16.msra.mxu0 0
        %582 = vmatprep.subr.bf16.mxu0 0
        %583 = vmatpush2.bf16.msra.mxu0 0
        %584 = vmatprep.subr.bf16.mxu0 0
        %585 = vmatpush2.bf16.msra.mxu0 0
        %586 = vmatprep.subr.bf16.mxu0 0
        %587 = vmatpush2.bf16.msra.mxu0 0
        %588 = vmatprep.subr.bf16.mxu0 0
        %589 = vmatpush2.bf16.msra.mxu0 0
        %590 = vmatprep.subr.bf16.mxu0 0
        %591 = vmatpush2.bf16.msra.mxu0 0
        %592 = vmatprep.subr.bf16.mxu0 0
        %593 = vmatpush2.bf16.msra.mxu0 0
        %594 = vmatprep.mubr.bf16.mxu0 0
        %595 = vmatmul.mubr.bf16.gmra.mxu0 %v490
        %v596 = vpop.f32.mrf.mxu0
        %v597 = vadd.f32 %v512, %v596
        %v598 = vpop.f32.mrf.mxu0
        %v599 = vpop.f32.mrf.mxu0
        %v600 = vpop.f32.mrf.mxu0
        %601 = vdwg.mxu0
        %v602 = vmul.f32 %v597, 0.2
        %v603 = vmax.f32 %v597, %v602
        %v604 = vpack.c.bf16 %v603, %v603
        %v605 = vld [vmem:[#allocation8] sm:$0xf]
        %v606 = vld [vmem:[#allocation8 + $0x4] sm:$0xf]
        %v607 = vld [vmem:[#allocation8 + $0x8] sm:$0xf]
        %v608 = vld [vmem:[#allocation8 + $0xc] sm:$0xf]
        %v609 = vld [vmem:[#allocation8 + $0x10] sm:$0xf]
        %v610 = vld [vmem:[#allocation8 + $0x14] sm:$0xf]
        %v611 = vld [vmem:[#allocation8 + $0x18] sm:$0xf]
        %v612 = vld [vmem:[#allocation8 + $0x1c] sm:$0xf]
        %v613 = vld [vmem:[#allocation8 + $0x20] sm:$0xf]
        %v614 = vld [vmem:[#allocation8 + $0x24] sm:$0xf]
        %v615 = vld [vmem:[#allocation8 + $0x28] sm:$0xf]
        %v616 = vld [vmem:[#allocation8 + $0x2c] sm:$0xf]
        %v617 = vld [vmem:[#allocation8 + $0x30] sm:$0xf]
        %v618 = vld [vmem:[#allocation8 + $0x34] sm:$0xf]
        %v619 = vld [vmem:[#allocation8 + $0x38] sm:$0xf]
        %v620 = vld [vmem:[#allocation8 + $0x3c] sm:$0xf]
        %v621 = vld [vmem:[%s6] sm:$0x1]
        %v623 = vlaneseq
        %v624 = vshrl.u32 %v623, 7
        %v625 = vsub.s32 0, %v624
        %v626 = vrot.slane %v621, %v625
        %v644 = vunpack.c.l.b16 %v605
        %v645 = vunpack.c.l.b16 %v606
        %v646 = vunpack.c.l.b16 %v607
        %v647 = vunpack.c.l.b16 %v608
        %v648 = vunpack.c.l.b16 %v609
        %v649 = vunpack.c.l.b16 %v610
        %v650 = vunpack.c.l.b16 %v611
        %v651 = vunpack.c.l.b16 %v612
        %v652 = vunpack.c.l.b16 %v613
        %v653 = vunpack.c.l.b16 %v614
        %v654 = vunpack.c.l.b16 %v615
        %v655 = vunpack.c.l.b16 %v616
        %v656 = vunpack.c.l.b16 %v617
        %v657 = vunpack.c.l.b16 %v618
        %v658 = vunpack.c.l.b16 %v619
        %v659 = vunpack.c.l.b16 %v620
        %v660 = vpack.c.b16 %v645, %v644
        %v661 = vpack.c.b16 %v647, %v646
        %v662 = vpack.c.b16 %v649, %v648
        %v663 = vpack.c.b16 %v651, %v650
        %v664 = vpack.c.b16 %v653, %v652
        %v665 = vpack.c.b16 %v655, %v654
        %v666 = vpack.c.b16 %v657, %v656
        %v667 = vpack.c.b16 %v659, %v658
        %676 = vmatprep.subr.bf16.mxu0 0
        %677 = vmatpush1.bf16.msra.mxu0 %v667
        %678 = vmatprep.subr.bf16.mxu0 0
        %679 = vmatpush1.bf16.msra.mxu0 %v666
        %680 = vmatprep.subr.bf16.mxu0 0
        %681 = vmatpush1.bf16.msra.mxu0 %v665
        %682 = vmatprep.subr.bf16.mxu0 0
        %683 = vmatpush1.bf16.msra.mxu0 %v664
        %684 = vmatprep.subr.bf16.mxu0 0
        %685 = vmatpush1.bf16.msra.mxu0 %v663
        %686 = vmatprep.subr.bf16.mxu0 0
        %687 = vmatpush1.bf16.msra.mxu0 %v662
        %688 = vmatprep.subr.bf16.mxu0 0
        %689 = vmatpush1.bf16.msra.mxu0 %v661
        %690 = vmatprep.subr.bf16.mxu0 0
        %691 = vmatpush1.bf16.msra.mxu0 %v660
        %692 = vmatprep.subr.bf16.mxu0 0
        %693 = vmatpush2.bf16.msra.mxu0 0
        %694 = vmatprep.subr.bf16.mxu0 0
        %695 = vmatpush2.bf16.msra.mxu0 0
        %696 = vmatprep.subr.bf16.mxu0 0
        %697 = vmatpush2.bf16.msra.mxu0 0
        %698 = vmatprep.subr.bf16.mxu0 0
        %699 = vmatpush2.bf16.msra.mxu0 0
        %700 = vmatprep.subr.bf16.mxu0 0
        %701 = vmatpush2.bf16.msra.mxu0 0
        %702 = vmatprep.subr.bf16.mxu0 0
        %703 = vmatpush2.bf16.msra.mxu0 0
        %704 = vmatprep.subr.bf16.mxu0 0
        %705 = vmatpush2.bf16.msra.mxu0 0
        %706 = vmatprep.subr.bf16.mxu0 0
        %707 = vmatpush2.bf16.msra.mxu0 0
        %708 = vmatprep.mubr.bf16.mxu0 0
        %709 = vmatmul.mubr.bf16.gmra.mxu0 %v604
        %v710 = vpop.f32.mrf.mxu0
        %v711 = vadd.f32 %v626, %v710
        %v712 = vpop.f32.mrf.mxu0
        %v713 = vpop.f32.mrf.mxu0
        %v714 = vpop.f32.mrf.mxu0
        %715 = vdwg.mxu0
        %v716 = vmul.f32 %v711, 0.2
        %v717 = vmax.f32 %v711, %v716
        %v718 = vpack.c.bf16 %v717, %v717
        %v719 = vld [vmem:[#allocation10] sm:$0xf]
        %v720 = vld [vmem:[#allocation10 + $0x4] sm:$0xf]
        %v721 = vld [vmem:[#allocation10 + $0x8] sm:$0xf]
        %v722 = vld [vmem:[#allocation10 + $0xc] sm:$0xf]
        %v723 = vld [vmem:[#allocation10 + $0x10] sm:$0xf]
        %v724 = vld [vmem:[#allocation10 + $0x14] sm:$0xf]
        %v725 = vld [vmem:[#allocation10 + $0x18] sm:$0xf]
        %v726 = vld [vmem:[#allocation10 + $0x1c] sm:$0xf]
        %v727 = vld [vmem:[#allocation10 + $0x20] sm:$0xf]
        %v728 = vld [vmem:[#allocation10 + $0x24] sm:$0xf]
        %v729 = vld [vmem:[#allocation10 + $0x28] sm:$0xf]
        %v730 = vld [vmem:[#allocation10 + $0x2c] sm:$0xf]
        %v731 = vld [vmem:[#allocation10 + $0x30] sm:$0xf]
        %v732 = vld [vmem:[#allocation10 + $0x34] sm:$0xf]
        %v733 = vld [vmem:[#allocation10 + $0x38] sm:$0xf]
        %v734 = vld [vmem:[#allocation10 + $0x3c] sm:$0xf]
        %v735 = vld [vmem:[%s8] sm:$0x1]
        %v737 = vlaneseq
        %v738 = vshrl.u32 %v737, 7
        %v739 = vsub.s32 0, %v738
        %v740 = vrot.slane %v735, %v739
        %v758 = vunpack.c.l.b16 %v719
        %v759 = vunpack.c.l.b16 %v720
        %v760 = vunpack.c.l.b16 %v721
        %v761 = vunpack.c.l.b16 %v722
        %v762 = vunpack.c.l.b16 %v723
        %v763 = vunpack.c.l.b16 %v724
        %v764 = vunpack.c.l.b16 %v725
        %v765 = vunpack.c.l.b16 %v726
        %v766 = vunpack.c.l.b16 %v727
        %v767 = vunpack.c.l.b16 %v728
        %v768 = vunpack.c.l.b16 %v729
        %v769 = vunpack.c.l.b16 %v730
        %v770 = vunpack.c.l.b16 %v731
        %v771 = vunpack.c.l.b16 %v732
        %v772 = vunpack.c.l.b16 %v733
        %v773 = vunpack.c.l.b16 %v734
        %v774 = vpack.c.b16 %v759, %v758
        %v775 = vpack.c.b16 %v761, %v760
        %v776 = vpack.c.b16 %v763, %v762
        %v777 = vpack.c.b16 %v765, %v764
        %v778 = vpack.c.b16 %v767, %v766
        %v779 = vpack.c.b16 %v769, %v768
        %v780 = vpack.c.b16 %v771, %v770
        %v781 = vpack.c.b16 %v773, %v772
        %790 = vmatprep.subr.bf16.mxu0 0
        %791 = vmatpush1.bf16.msra.mxu0 %v781
        %792 = vmatprep.subr.bf16.mxu0 0
        %793 = vmatpush1.bf16.msra.mxu0 %v780
        %794 = vmatprep.subr.bf16.mxu0 0
        %795 = vmatpush1.bf16.msra.mxu0 %v779
        %796 = vmatprep.subr.bf16.mxu0 0
        %797 = vmatpush1.bf16.msra.mxu0 %v778
        %798 = vmatprep.subr.bf16.mxu0 0
        %799 = vmatpush1.bf16.msra.mxu0 %v777
        %800 = vmatprep.subr.bf16.mxu0 0
        %801 = vmatpush1.bf16.msra.mxu0 %v776
        %802 = vmatprep.subr.bf16.mxu0 0
        %803 = vmatpush1.bf16.msra.mxu0 %v775
        %804 = vmatprep.subr.bf16.mxu0 0
        %805 = vmatpush1.bf16.msra.mxu0 %v774
        %806 = vmatprep.subr.bf16.mxu0 0
        %807 = vmatpush2.bf16.msra.mxu0 0
        %808 = vmatprep.subr.bf16.mxu0 0
        %809 = vmatpush2.bf16.msra.mxu0 0
        %810 = vmatprep.subr.bf16.mxu0 0
        %811 = vmatpush2.bf16.msra.mxu0 0
        %812 = vmatprep.subr.bf16.mxu0 0
        %813 = vmatpush2.bf16.msra.mxu0 0
        %814 = vmatprep.subr.bf16.mxu0 0
        %815 = vmatpush2.bf16.msra.mxu0 0
        %816 = vmatprep.subr.bf16.mxu0 0
        %817 = vmatpush2.bf16.msra.mxu0 0
        %818 = vmatprep.subr.bf16.mxu0 0
        %819 = vmatpush2.bf16.msra.mxu0 0
        %820 = vmatprep.subr.bf16.mxu0 0
        %821 = vmatpush2.bf16.msra.mxu0 0
        %822 = vmatprep.mubr.bf16.mxu0 0
        %823 = vmatmul.mubr.bf16.gmra.mxu0 %v718
        %v824 = vpop.f32.mrf.mxu0
        %v825 = vadd.f32 %v740, %v824
        %v826 = vpop.f32.mrf.mxu0
        %v827 = vpop.f32.mrf.mxu0
        %v828 = vpop.f32.mrf.mxu0
        %829 = vdwg.mxu0
        %v830 = vmul.f32 %v825, 0.2
        %v831 = vmax.f32 %v825, %v830
        %v832 = vrot.slane %v831, 4
        %v833 = vadd.f32 %v831, %v832
        %v834 = vrot.slane %v833, 2
        %v835 = vadd.f32 %v833, %v834
        %v836 = vrot.slane %v835, 1
        %v837 = vadd.f32 %v835, %v836
        %v838 = vmul.f32 %v837, 0.125
        %839 = vst [vmem:[%s404] sm:$0x1] %v838
        %s840 = sand.u32 %s230, 1
        %s841 = scalar_lea.sflag [#allocation4], %s840
        %s842 = sand.u32 %s230, 1
        %s843 = scalar_lea.vmem [#allocation11], %s842
        // Predicated region
        $region77: #{tpu_custom_call.1} parent=55 // pred_check
          %p844 = pneg %p240
        $region78: #{tpu_custom_call.1} parent=55 // pred_check_branch
          %846 = sbr.rel (%p844) target = $region80
        $region79: #{tpu_custom_call.1} parent=55 // pred_region
          %s848 = ssub.s32 16, 16
          %849 = vsyncadd %s841, %s848
          %s850 = smul.addr %s28, 16
          %s851 = scalar_lea.hbm %s9, %s850
          %s853 = sshll.u32 %s843, 4
          %s854 = int_to_ptr.vmem [resolvable:$true] %s853
          %856 = dma.vmem_to_hbm [thread:$0]  %s854, 16, %s851, %s841
        $region80: #{tpu_custom_call.1} parent=55 // pred_fallthru
          _
      $region56: #{tpu_custom_call.1} parent=5 // pred_fallthru
        _
      %p857 = scmp.le.s32.totalorder 2, %s23
      // Predicated region
      $region81: #{tpu_custom_call.1} parent=5 // pred_check
        %p858 = pneg %p857
      $region82: #{tpu_custom_call.1} parent=5 // pred_check_branch
        %860 = sbr.rel (%p858) target = $region84
      $region83: #{tpu_custom_call.1} parent=5 // pred_region
        %s861 = ssub.s32 %s23, 2
        // Predicated region
        $region85: #{tpu_custom_call.1} parent=83 // pred_check
          %p862 = pneg %p246
        $region86: #{tpu_custom_call.1} parent=83 // pred_check_branch
          %864 = sbr.rel (%p862) target = $region88
        $region87: #{tpu_custom_call.1} parent=83 // pred_region
          %s865 = sand.u32 %s231, 1
          %s866 = scalar_lea.sflag [#allocation4], %s865
          %s867 = sand.u32 %s231, 1
          %s868 = scalar_lea.vmem [#allocation11], %s867
          %869 = dma.done %s866, 16
        $region88: #{tpu_custom_call.1} parent=83 // pred_fallthru
          _
      $region84: #{tpu_custom_call.1} parent=5 // pred_fallthru
        _
    $region6: #{tpu_custom_call.1} parent=1 // loop_footer
      %s27 = sadd.s32 1, %s23
    $region7: #{tpu_custom_call.1} parent=1 // loop_footer_branch
      %22 = sbr.rel target = $region3
    $region8: #{tpu_custom_call.1} parent=1 // loop_exit
      _
    %870 = vsyncpa [#allocation3], 1
    %s871 = scalar_lea.sflag [#allocation3], 1
    %872 = vsyncpa %s871, 1
    %873 = vsyncpa [#allocation6], 1
    %874 = vsyncpa [#allocation9], 1
    %875 = vsyncpa [#allocation4], 1
    %s876 = scalar_lea.sflag [#allocation4], 1
    %877 = vsyncpa %s876, 1

</llo_original>
